<compile_context>
chip_gen: v7x
topology: tpu7x:2x2x1
jax: 0.10.0
libtpu: 0.0.40
codegen_flags: <defaults>
</compile_context>

<pallas_src>
import jax
import jax.numpy as jnp
from jax import lax
from jax.experimental import pallas as pl
from jax.experimental.pallas import tpu as pltpu

NUM_SQUARINGS = 10   # non-top eigencomponents suppressed by (l2/l1)^(2^10)


def _top_eig_sq(f):
    """Largest eigenvalue of f @ f.T (== sigma_max(f)^2) via repeated squaring."""
    f = f.astype(jnp.float32)
    # (n, n) Gram on the MXU; contract the lane (last) dim of both operands
    # -> no explicit transpose / XLU churn.
    g = lax.dot_general(f, f, (((1,), (1,)), ((), ())),
                        preferred_element_type=jnp.float32)
    n = g.shape[0]

    # Repeated squaring: h -> h @ h, rescaled by the inverse Frobenius norm
    # (XLU reduce + EUP rsqrt + VPU scale) so eigenvalues stay in f32 range.
    # Static Python unroll (short, fixed trip count; no loop-hoisted consts).
    h = g * lax.rsqrt(jnp.sum(g * g) + 1e-30)
    for _ in range(NUM_SQUARINGS):
        h = jnp.dot(h, h, preferred_element_type=jnp.float32)
        h = h * lax.rsqrt(jnp.sum(h * h) + 1e-30)

    # Fixed pseudo-random lane-dense probe (LCG over the lane index); almost
    # surely not orthogonal to the top eigenvector (unlike all-ones on
    # zero-mean features).
    idx = lax.broadcasted_iota(jnp.int32, (1, n), 1)
    bits = idx * 1103515245 + 12345
    probe = 0.5 + jnp.bitwise_and(bits, 1023).astype(jnp.float32) * (1.0 / 1024.0)

    # Project the probe onto the top eigenspace, then Rayleigh-quotient it
    # against the *original* Gram (row-vector matvecs stay lane-dense).
    v = jnp.dot(probe, h, preferred_element_type=jnp.float32)   # (1, n)
    w = jnp.dot(v, g, preferred_element_type=jnp.float32)       # (1, n)
    return jnp.sum(v * w) / (jnp.sum(v * v) + 1e-30)


def bsp_kernel(x_ref, out_ref):
    # TODO(synk): exact torch.svd has no Pallas equivalent; sigma_max^2 is
    # recovered via Gram-matrix repeated squaring + Rayleigh quotient.
    # x_ref: (1, n, m) block holding f_s (grid step 0) or f_t (grid step 1).
    lam = _top_eig_sq(x_ref[0])
    # Lane-dense (1, 8, 128) output tile -> single unmasked store; the wrapper
    # reads element [i, 0, 0].
    out_ref[...] = jnp.full(out_ref.shape, lam, jnp.float32)


def _round_up(x, m):
    return ((x + m - 1) // m) * m


def batch_spectral_penalization_loss(f_s, f_t):
    """f_s, f_t: (N, F) float arrays. Returns scalar float32 BSP loss."""
    # TODO(synk): forward-only; no custom VJP is defined, so gradients do not
    # flow through the pallas_call (real training use needs 2*sigma*u*v^T).
    f_s = jnp.asarray(f_s, jnp.float32)
    f_t = jnp.asarray(f_t, jnp.float32)

    # sigma(f) == sigma(f.T): orient each matrix so the Gram is built over the
    # smaller dimension (min(N, F) x min(N, F)).
    if f_s.shape[0] > f_s.shape[1]:
        f_s = f_s.T
    if f_t.shape[0] > f_t.shape[1]:
        f_t = f_t.T

    # Zero row/col padding preserves singular values -> pad both matrices to a
    # common (8, 128)-aligned shape and stack so one grid=(2,) call covers
    # both (one matrix per TensorCore on v7x, pipelined steps on v5e/v6e).
    n = _round_up(max(f_s.shape[0], f_t.shape[0]), 8)
    m = _round_up(max(f_s.shape[1], f_t.shape[1]), 128)

    def pad(f):
        return jnp.pad(f, ((0, n - f.shape[0]), (0, m - f.shape[1])))

    x = jnp.stack([pad(f_s), pad(f_t)])  # (2, n, m)

    out = pl.pallas_call(
        bsp_kernel,
        out_shape=jax.ShapeDtypeStruct((2, 8, 128), jnp.float32),
        grid=(2,),
        in_specs=[pl.BlockSpec((1, n, m), lambda i: (i, 0, 0))],
        out_specs=pl.BlockSpec((1, 8, 128), lambda i: (i, 0, 0)),
        compiler_params=pltpu.CompilerParams(
            dimension_semantics=("parallel",)),
    )(x)
    return out[0, 0, 0] + out[1, 0, 0]


if __name__ == "__main__":
    key = jax.random.PRNGKey(0)
    k_s, k_t = jax.random.split(key)

    N, F = 8, 32  # small mini-batch of feature vectors (N, F)
    f_s = jax.random.normal(k_s, (N, F), dtype=jnp.float32)
    f_t = jax.random.normal(k_t, (N, F), dtype=jnp.float32)

    loss = batch_spectral_penalization_loss(f_s, f_t)
    loss = jax.block_until_ready(loss)

    # Pure-JAX reference (same math as the torch.svd path).
    s_s = jnp.linalg.svd(f_s, compute_uv=False)
    s_t = jnp.linalg.svd(f_t, compute_uv=False)
    ref = s_s[0] ** 2 + s_t[0] ** 2
    assert jnp.allclose(loss, ref, rtol=5e-3, atol=1e-3), (loss, ref)

    print("KERNEL_OK")
</pallas_src>

<mosaic_0001>
module attributes {stable_mosaic.version = 11 : i64} {
  func.func @bsp_kernel(%arg0: i32, %arg1: memref<1x8x128xf32, #tpu.memory_space<vmem>>, %arg2: memref<1x8x128xf32, #tpu.memory_space<vmem>>) attributes {dimension_semantics = [#tpu.dimension_semantics<parallel>], iteration_bounds = array<i64: 2>, scalar_prefetch = 0 : i64, scratch_operands = 0 : i64, tpu.core_type = #tpu.core_type<tc>, window_params = [{transform_indices = @transform_0, window_bounds = array<i64: 1, 8, 128>}, {transform_indices = @transform_1, window_bounds = array<i64: 1, 8, 128>}]} {
    %c0 = arith.constant 0 : index
    %c0_0 = arith.constant 0 : index
    %c0_1 = arith.constant 0 : index
    %0 = vector.load %arg1[%c0, %c0_0, %c0_1] : memref<1x8x128xf32, #tpu.memory_space<vmem>>, vector<1x8x128xf32>
    %1 = vector.shape_cast %0 : vector<1x8x128xf32> to vector<8x128xf32>
    %cst = arith.constant dense<0.000000e+00> : vector<8x8xf32>
    %2 = tpu.matmul %1, %1, %cst {dimension_numbers = #tpu.dot_dimension_numbers<[1], [1], [0], [0], [0, 0, 1, 0], [], []>} : vector<8x128xf32>, vector<8x128xf32>, vector<8x8xf32> -> vector<8x8xf32>
    %3 = arith.mulf %2, %2 : vector<8x8xf32>
    %4 = vector.shape_cast %3 : vector<8x8xf32> to vector<1x8x8xf32>
    %cst_2 = arith.constant dense<0.000000e+00> : vector<1xf32>
    %5 = vector.multi_reduction <add>, %4, %cst_2 [1, 2] : vector<1x8x8xf32> to vector<1xf32>
    %6 = vector.shape_cast %5 : vector<1xf32> to vector<1x1x1xf32>
    %7 = vector.extract %6[0, 0, 0] : f32 from vector<1x1x1xf32>
    %cst_3 = arith.constant 1.000000e-30 : f32
    %8 = arith.addf %7, %cst_3 : f32
    %9 = math.rsqrt %8 : f32
    %10 = vector.broadcast %9 : f32 to vector<8x8xf32>
    %11 = arith.mulf %2, %10 : vector<8x8xf32>
    %cst_4 = arith.constant dense<0.000000e+00> : vector<8x8xf32>
    %12 = tpu.matmul %11, %11, %cst_4 {dimension_numbers = #tpu.dot_dimension_numbers<[1], [0], [0], [1], [0, 0, 1, 1], [], []>} : vector<8x8xf32>, vector<8x8xf32>, vector<8x8xf32> -> vector<8x8xf32>
    %13 = arith.mulf %12, %12 : vector<8x8xf32>
    %14 = vector.shape_cast %13 : vector<8x8xf32> to vector<1x8x8xf32>
    %cst_5 = arith.constant dense<0.000000e+00> : vector<1xf32>
    %15 = vector.multi_reduction <add>, %14, %cst_5 [1, 2] : vector<1x8x8xf32> to vector<1xf32>
    %16 = vector.shape_cast %15 : vector<1xf32> to vector<1x1x1xf32>
    %17 = vector.extract %16[0, 0, 0] : f32 from vector<1x1x1xf32>
    %cst_6 = arith.constant 1.000000e-30 : f32
    %18 = arith.addf %17, %cst_6 : f32
    %19 = math.rsqrt %18 : f32
    %20 = vector.broadcast %19 : f32 to vector<8x8xf32>
    %21 = arith.mulf %12, %20 : vector<8x8xf32>
    %cst_7 = arith.constant dense<0.000000e+00> : vector<8x8xf32>
    %22 = tpu.matmul %21, %21, %cst_7 {dimension_numbers = #tpu.dot_dimension_numbers<[1], [0], [0], [1], [0, 0, 1, 1], [], []>} : vector<8x8xf32>, vector<8x8xf32>, vector<8x8xf32> -> vector<8x8xf32>
    %23 = arith.mulf %22, %22 : vector<8x8xf32>
    %24 = vector.shape_cast %23 : vector<8x8xf32> to vector<1x8x8xf32>
    %cst_8 = arith.constant dense<0.000000e+00> : vector<1xf32>
    %25 = vector.multi_reduction <add>, %24, %cst_8 [1, 2] : vector<1x8x8xf32> to vector<1xf32>
    %26 = vector.shape_cast %25 : vector<1xf32> to vector<1x1x1xf32>
    %27 = vector.extract %26[0, 0, 0] : f32 from vector<1x1x1xf32>
    %cst_9 = arith.constant 1.000000e-30 : f32
    %28 = arith.addf %27, %cst_9 : f32
    %29 = math.rsqrt %28 : f32
    %30 = vector.broadcast %29 : f32 to vector<8x8xf32>
    %31 = arith.mulf %22, %30 : vector<8x8xf32>
    %cst_10 = arith.constant dense<0.000000e+00> : vector<8x8xf32>
    %32 = tpu.matmul %31, %31, %cst_10 {dimension_numbers = #tpu.dot_dimension_numbers<[1], [0], [0], [1], [0, 0, 1, 1], [], []>} : vector<8x8xf32>, vector<8x8xf32>, vector<8x8xf32> -> vector<8x8xf32>
    %33 = arith.mulf %32, %32 : vector<8x8xf32>
    %34 = vector.shape_cast %33 : vector<8x8xf32> to vector<1x8x8xf32>
    %cst_11 = arith.constant dense<0.000000e+00> : vector<1xf32>
    %35 = vector.multi_reduction <add>, %34, %cst_11 [1, 2] : vector<1x8x8xf32> to vector<1xf32>
    %36 = vector.shape_cast %35 : vector<1xf32> to vector<1x1x1xf32>
    %37 = vector.extract %36[0, 0, 0] : f32 from vector<1x1x1xf32>
    %cst_12 = arith.constant 1.000000e-30 : f32
    %38 = arith.addf %37, %cst_12 : f32
    %39 = math.rsqrt %38 : f32
    %40 = vector.broadcast %39 : f32 to vector<8x8xf32>
    %41 = arith.mulf %32, %40 : vector<8x8xf32>
    %cst_13 = arith.constant dense<0.000000e+00> : vector<8x8xf32>
    %42 = tpu.matmul %41, %41, %cst_13 {dimension_numbers = #tpu.dot_dimension_numbers<[1], [0], [0], [1], [0, 0, 1, 1], [], []>} : vector<8x8xf32>, vector<8x8xf32>, vector<8x8xf32> -> vector<8x8xf32>
    %43 = arith.mulf %42, %42 : vector<8x8xf32>
    %44 = vector.shape_cast %43 : vector<8x8xf32> to vector<1x8x8xf32>
    %cst_14 = arith.constant dense<0.000000e+00> : vector<1xf32>
    %45 = vector.multi_reduction <add>, %44, %cst_14 [1, 2] : vector<1x8x8xf32> to vector<1xf32>
    %46 = vector.shape_cast %45 : vector<1xf32> to vector<1x1x1xf32>
    %47 = vector.extract %46[0, 0, 0] : f32 from vector<1x1x1xf32>
    %cst_15 = arith.constant 1.000000e-30 : f32
    %48 = arith.addf %47, %cst_15 : f32
    %49 = math.rsqrt %48 : f32
    %50 = vector.broadcast %49 : f32 to vector<8x8xf32>
    %51 = arith.mulf %42, %50 : vector<8x8xf32>
    %cst_16 = arith.constant dense<0.000000e+00> : vector<8x8xf32>
    %52 = tpu.matmul %51, %51, %cst_16 {dimension_numbers = #tpu.dot_dimension_numbers<[1], [0], [0], [1], [0, 0, 1, 1], [], []>} : vector<8x8xf32>, vector<8x8xf32>, vector<8x8xf32> -> vector<8x8xf32>
    %53 = arith.mulf %52, %52 : vector<8x8xf32>
    %54 = vector.shape_cast %53 : vector<8x8xf32> to vector<1x8x8xf32>
    %cst_17 = arith.constant dense<0.000000e+00> : vector<1xf32>
    %55 = vector.multi_reduction <add>, %54, %cst_17 [1, 2] : vector<1x8x8xf32> to vector<1xf32>
    %56 = vector.shape_cast %55 : vector<1xf32> to vector<1x1x1xf32>
    %57 = vector.extract %56[0, 0, 0] : f32 from vector<1x1x1xf32>
    %cst_18 = arith.constant 1.000000e-30 : f32
    %58 = arith.addf %57, %cst_18 : f32
    %59 = math.rsqrt %58 : f32
    %60 = vector.broadcast %59 : f32 to vector<8x8xf32>
    %61 = arith.mulf %52, %60 : vector<8x8xf32>
    %cst_19 = arith.constant dense<0.000000e+00> : vector<8x8xf32>
    %62 = tpu.matmul %61, %61, %cst_19 {dimension_numbers = #tpu.dot_dimension_numbers<[1], [0], [0], [1], [0, 0, 1, 1], [], []>} : vector<8x8xf32>, vector<8x8xf32>, vector<8x8xf32> -> vector<8x8xf32>
    %63 = arith.mulf %62, %62 : vector<8x8xf32>
    %64 = vector.shape_cast %63 : vector<8x8xf32> to vector<1x8x8xf32>
    %cst_20 = arith.constant dense<0.000000e+00> : vector<1xf32>
    %65 = vector.multi_reduction <add>, %64, %cst_20 [1, 2] : vector<1x8x8xf32> to vector<1xf32>
    %66 = vector.shape_cast %65 : vector<1xf32> to vector<1x1x1xf32>
    %67 = vector.extract %66[0, 0, 0] : f32 from vector<1x1x1xf32>
    %cst_21 = arith.constant 1.000000e-30 : f32
    %68 = arith.addf %67, %cst_21 : f32
    %69 = math.rsqrt %68 : f32
    %70 = vector.broadcast %69 : f32 to vector<8x8xf32>
    %71 = arith.mulf %62, %70 : vector<8x8xf32>
    %cst_22 = arith.constant dense<0.000000e+00> : vector<8x8xf32>
    %72 = tpu.matmul %71, %71, %cst_22 {dimension_numbers = #tpu.dot_dimension_numbers<[1], [0], [0], [1], [0, 0, 1, 1], [], []>} : vector<8x8xf32>, vector<8x8xf32>, vector<8x8xf32> -> vector<8x8xf32>
    %73 = arith.mulf %72, %72 : vector<8x8xf32>
    %74 = vector.shape_cast %73 : vector<8x8xf32> to vector<1x8x8xf32>
    %cst_23 = arith.constant dense<0.000000e+00> : vector<1xf32>
    %75 = vector.multi_reduction <add>, %74, %cst_23 [1, 2] : vector<1x8x8xf32> to vector<1xf32>
    %76 = vector.shape_cast %75 : vector<1xf32> to vector<1x1x1xf32>
    %77 = vector.extract %76[0, 0, 0] : f32 from vector<1x1x1xf32>
    %cst_24 = arith.constant 1.000000e-30 : f32
    %78 = arith.addf %77, %cst_24 : f32
    %79 = math.rsqrt %78 : f32
    %80 = vector.broadcast %79 : f32 to vector<8x8xf32>
    %81 = arith.mulf %72, %80 : vector<8x8xf32>
    %cst_25 = arith.constant dense<0.000000e+00> : vector<8x8xf32>
    %82 = tpu.matmul %81, %81, %cst_25 {dimension_numbers = #tpu.dot_dimension_numbers<[1], [0], [0], [1], [0, 0, 1, 1], [], []>} : vector<8x8xf32>, vector<8x8xf32>, vector<8x8xf32> -> vector<8x8xf32>
    %83 = arith.mulf %82, %82 : vector<8x8xf32>
    %84 = vector.shape_cast %83 : vector<8x8xf32> to vector<1x8x8xf32>
    %cst_26 = arith.constant dense<0.000000e+00> : vector<1xf32>
    %85 = vector.multi_reduction <add>, %84, %cst_26 [1, 2] : vector<1x8x8xf32> to vector<1xf32>
    %86 = vector.shape_cast %85 : vector<1xf32> to vector<1x1x1xf32>
    %87 = vector.extract %86[0, 0, 0] : f32 from vector<1x1x1xf32>
    %cst_27 = arith.constant 1.000000e-30 : f32
    %88 = arith.addf %87, %cst_27 : f32
    %89 = math.rsqrt %88 : f32
    %90 = vector.broadcast %89 : f32 to vector<8x8xf32>
    %91 = arith.mulf %82, %90 : vector<8x8xf32>
    %cst_28 = arith.constant dense<0.000000e+00> : vector<8x8xf32>
    %92 = tpu.matmul %91, %91, %cst_28 {dimension_numbers = #tpu.dot_dimension_numbers<[1], [0], [0], [1], [0, 0, 1, 1], [], []>} : vector<8x8xf32>, vector<8x8xf32>, vector<8x8xf32> -> vector<8x8xf32>
    %93 = arith.mulf %92, %92 : vector<8x8xf32>
    %94 = vector.shape_cast %93 : vector<8x8xf32> to vector<1x8x8xf32>
    %cst_29 = arith.constant dense<0.000000e+00> : vector<1xf32>
    %95 = vector.multi_reduction <add>, %94, %cst_29 [1, 2] : vector<1x8x8xf32> to vector<1xf32>
    %96 = vector.shape_cast %95 : vector<1xf32> to vector<1x1x1xf32>
    %97 = vector.extract %96[0, 0, 0] : f32 from vector<1x1x1xf32>
    %cst_30 = arith.constant 1.000000e-30 : f32
    %98 = arith.addf %97, %cst_30 : f32
    %99 = math.rsqrt %98 : f32
    %100 = vector.broadcast %99 : f32 to vector<8x8xf32>
    %101 = arith.mulf %92, %100 : vector<8x8xf32>
    %cst_31 = arith.constant dense<0.000000e+00> : vector<8x8xf32>
    %102 = tpu.matmul %101, %101, %cst_31 {dimension_numbers = #tpu.dot_dimension_numbers<[1], [0], [0], [1], [0, 0, 1, 1], [], []>} : vector<8x8xf32>, vector<8x8xf32>, vector<8x8xf32> -> vector<8x8xf32>
    %103 = arith.mulf %102, %102 : vector<8x8xf32>
    %104 = vector.shape_cast %103 : vector<8x8xf32> to vector<1x8x8xf32>
    %cst_32 = arith.constant dense<0.000000e+00> : vector<1xf32>
    %105 = vector.multi_reduction <add>, %104, %cst_32 [1, 2] : vector<1x8x8xf32> to vector<1xf32>
    %106 = vector.shape_cast %105 : vector<1xf32> to vector<1x1x1xf32>
    %107 = vector.extract %106[0, 0, 0] : f32 from vector<1x1x1xf32>
    %cst_33 = arith.constant 1.000000e-30 : f32
    %108 = arith.addf %107, %cst_33 : f32
    %109 = math.rsqrt %108 : f32
    %110 = vector.broadcast %109 : f32 to vector<8x8xf32>
    %111 = arith.mulf %102, %110 : vector<8x8xf32>
    %112 = tpu.iota {dimensions = array<i32: 1>} : vector<1x8xi32>
    %c1103515245_i32 = arith.constant 1103515245 : i32
    %113 = vector.broadcast %c1103515245_i32 : i32 to vector<1x8xi32>
    %114 = arith.muli %112, %113 : vector<1x8xi32>
    %c12345_i32 = arith.constant 12345 : i32
    %115 = vector.broadcast %c12345_i32 : i32 to vector<1x8xi32>
    %116 = arith.addi %114, %115 : vector<1x8xi32>
    %c1023_i32 = arith.constant 1023 : i32
    %117 = vector.broadcast %c1023_i32 : i32 to vector<1x8xi32>
    %118 = arith.andi %116, %117 : vector<1x8xi32>
    %119 = arith.sitofp %118 : vector<1x8xi32> to vector<1x8xf32>
    %cst_34 = arith.constant 9.765625E-4 : f32
    %120 = vector.broadcast %cst_34 : f32 to vector<1x8xf32>
    %121 = arith.mulf %119, %120 : vector<1x8xf32>
    %cst_35 = arith.constant 5.000000e-01 : f32
    %122 = vector.broadcast %cst_35 : f32 to vector<1x8xf32>
    %123 = arith.addf %122, %121 : vector<1x8xf32>
    %cst_36 = arith.constant dense<0.000000e+00> : vector<1x8xf32>
    %124 = tpu.matmul %123, %111, %cst_36 {dimension_numbers = #tpu.dot_dimension_numbers<[1], [0], [0], [1], [0, 0, 1, 1], [], []>} : vector<1x8xf32>, vector<8x8xf32>, vector<1x8xf32> -> vector<1x8xf32>
    %cst_37 = arith.constant dense<0.000000e+00> : vector<1x8xf32>
    %125 = tpu.matmul %124, %2, %cst_37 {dimension_numbers = #tpu.dot_dimension_numbers<[1], [0], [0], [1], [0, 0, 1, 1], [], []>} : vector<1x8xf32>, vector<8x8xf32>, vector<1x8xf32> -> vector<1x8xf32>
    %126 = arith.mulf %124, %125 : vector<1x8xf32>
    %127 = vector.shape_cast %126 : vector<1x8xf32> to vector<1x1x8xf32>
    %cst_38 = arith.constant dense<0.000000e+00> : vector<1xf32>
    %128 = vector.multi_reduction <add>, %127, %cst_38 [1, 2] : vector<1x1x8xf32> to vector<1xf32>
    %129 = vector.shape_cast %128 : vector<1xf32> to vector<1x1x1xf32>
    %130 = vector.extract %129[0, 0, 0] : f32 from vector<1x1x1xf32>
    %131 = arith.mulf %124, %124 : vector<1x8xf32>
    %132 = vector.shape_cast %131 : vector<1x8xf32> to vector<1x1x8xf32>
    %cst_39 = arith.constant dense<0.000000e+00> : vector<1xf32>
    %133 = vector.multi_reduction <add>, %132, %cst_39 [1, 2] : vector<1x1x8xf32> to vector<1xf32>
    %134 = vector.shape_cast %133 : vector<1xf32> to vector<1x1x1xf32>
    %135 = vector.extract %134[0, 0, 0] : f32 from vector<1x1x1xf32>
    %cst_40 = arith.constant 1.000000e-30 : f32
    %136 = arith.addf %135, %cst_40 : f32
    %137 = arith.divf %130, %136 : f32
    %138 = vector.broadcast %137 : f32 to vector<1x8x128xf32>
    %c0_41 = arith.constant 0 : index
    %c0_42 = arith.constant 0 : index
    %c0_43 = arith.constant 0 : index
    %139 = vector.load %arg2[%c0_41, %c0_42, %c0_43] : memref<1x8x128xf32, #tpu.memory_space<vmem>>, vector<1x8x128xf32>
    tpu.vector_store %arg2[%c0_41, %c0_42, %c0_43], %138 {strides = array<i32>} : memref<1x8x128xf32, #tpu.memory_space<vmem>>, vector<1x8x128xf32>,
    return
  }
  func.func @transform_0(%arg0: i32) -> (i32, i32, i32) {
    %c0_i32 = arith.constant 0 : i32
    %c0_i32_0 = arith.constant 0 : i32
    %c0_i32_1 = arith.constant 0 : i32
    return %arg0, %c0_i32, %c0_i32_0 : i32, i32, i32
  }
  func.func @transform_1(%arg0: i32) -> (i32, i32, i32) {
    %c0_i32 = arith.constant 0 : i32
    %c0_i32_0 = arith.constant 0 : i32
    %c0_i32_1 = arith.constant 0 : i32
    return %arg0, %c0_i32, %c0_i32_0 : i32, i32, i32
  }
}

</mosaic_0001>

<llo_original>
// kernel: tpu_custom_call.1
$region0: #{tpu_custom_call.1}
  #allocation0 [shape = 'u32[]', space=smem, size = 0x4, offset = 0x4, fixed_abs, tag = 'smem constant byte address 0x4 - core index']
  #allocation1 [shape = 'u32[144,128]{1,0:T(1,128)}', space=vmem, size = 0x12000, scoped, tag = 'internal scratch']
  %s0 = inlined_call_operand.hbm [shape: f32[2,8,128], index: 0, kind: input, shape index: {}]
  %s1 = inlined_call_operand.hbm [shape: f32[2,8,128], index: 1, kind: output, shape index: {}]
  %s2 = sld [smem:[#allocation0]]
  $region41: #{tpu_custom_call.1} parent=0
    _
  %s4 = ssub.s32 1, %s2
  %s5 = scalar_select 0, %s4, %s2
  $region1: #{tpu_custom_call.1} parent=0
    #allocation2 [shape = 'u8[8192]{0}', space=vmem, size = 0x2000, scoped, tag = 'input window, operand 0']
    #allocation3 [shape = 's32[2]{0}', space=sflag, size = 0x8, scoped, tag = 'scoped memory for tpu_custom_call.1']
    #allocation4 [shape = 's32[2]{0}', space=sflag, size = 0x8, scoped, tag = 'scoped memory for tpu_custom_call.1']
    #allocation5 [shape = 'u8[8192]{0}', space=vmem, size = 0x2000, scoped, tag = 'output window, operand 0']
    %6 = vsyncpa [#allocation3], 0
    %s7 = scalar_lea.sflag [#allocation3], 1
    %8 = vsyncpa %s7, 0
    %9 = vsyncpa [#allocation4], 0
    %s10 = scalar_lea.sflag [#allocation4], 1
    %11 = vsyncpa %s10, 0
    loop: start=0, step=1, limit=4
    $region2: #{tpu_custom_call.1} parent=1 // loop_pre_header
      _
    $region3: #{tpu_custom_call.1} parent=1 // loop_header
      %s13 = sphi 0, %s17
      %p14 = scmp.ge.s32.totalorder %s13, 4
      %s23 = sphi 0, %s25
      %s26 = sphi 0, %s23
      %s27 = sphi 0, %s26
      %s43 = sphi 0, %s27
      %s49 = sphi 0, %s51
      %s52 = sphi 0, %s49
      %s53 = sphi 0, %s52
      %s69 = sphi 0, %s53
    $region4: #{tpu_custom_call.1} parent=1 // loop_header_branch
      %16 = sbr.rel (%p14) target = $region8
    $region5: #{tpu_custom_call.1} parent=1 // loop_body
      %s18 = ssub.s32 %s13, 1
      %s19 = ssub.s32 %s13, 2
      %s20 = sadd.s32 %s13, 1
      %s21 = ssub.s32 %s13, %s20
      %p22 = scmp.eq.s32.totalorder %s21, 0
      %s24 = sadd.s32 %s23, 1
      %s25 = scalar_select %p22, %s23, %s24
      %p28 = pneg %p22
      %p29 = scmp.eq.s32.totalorder %s13, 1
      %p30 = por %p28, %p29
      %p31 = scmp.ne.s32.totalorder %s23, %s26
      %p32 = scmp.eq.s32.totalorder %s13, 0
      %p33 = por %p31, %p32
      %p34 = scmp.ne.s32.totalorder %s23, %s26
      %p35 = scmp.eq.s32.totalorder %s18, 1
      %p36 = por %p34, %p35
      %p37 = scmp.ne.s32.totalorder %s26, %s27
      %p38 = scmp.eq.s32.totalorder %s18, 0
      %p39 = por %p37, %p38
      %p40 = scmp.ne.s32.totalorder %s26, %s27
      %p41 = scmp.eq.s32.totalorder %s19, 1
      %p42 = por %p40, %p41
      %p44 = scmp.ne.s32.totalorder %s27, %s43
      %p45 = scmp.eq.s32.totalorder %s19, 0
      %p46 = por %p44, %p45
      %s47 = ssub.s32 %s13, %s20
      %p48 = scmp.eq.s32.totalorder %s47, 0
      %s50 = sadd.s32 %s49, 1
      %s51 = scalar_select %p48, %s49, %s50
      %p54 = pneg %p48
      %p55 = scmp.eq.s32.totalorder %s13, 1
      %p56 = por %p54, %p55
      %p57 = scmp.ne.s32.totalorder %s49, %s52
      %p58 = scmp.eq.s32.totalorder %s13, 0
      %p59 = por %p57, %p58
      %p60 = scmp.ne.s32.totalorder %s49, %s52
      %p61 = scmp.eq.s32.totalorder %s18, 1
      %p62 = por %p60, %p61
      %p63 = scmp.ne.s32.totalorder %s52, %s53
      %p64 = scmp.eq.s32.totalorder %s18, 0
      %p65 = por %p63, %p64
      %p66 = scmp.ne.s32.totalorder %s52, %s53
      %p67 = scmp.eq.s32.totalorder %s19, 1
      %p68 = por %p66, %p67
      %p70 = scmp.ne.s32.totalorder %s53, %s69
      %p71 = scmp.eq.s32.totalorder %s19, 0
      %p72 = por %p70, %p71
      %p73 = scmp.le.s32.totalorder 1, %s13
      %p74 = scmp.lt.s32.totalorder %s13, 3
      %p75 = pnand %p73, %p74
      %p76 = pneg %p75
      // Predicated region
      $region9: #{tpu_custom_call.1} parent=5 // pred_check
        _
      $region10: #{tpu_custom_call.1} parent=5 // pred_check_branch
        %78 = sbr.rel (%p75) target = $region12
      $region11: #{tpu_custom_call.1} parent=5 // pred_region
        %s79 = ssub.s32 %s13, 1
      $region12: #{tpu_custom_call.1} parent=5 // pred_fallthru
        _
      %p80 = scmp.lt.s32.totalorder %s13, 2
      // Predicated region
      $region13: #{tpu_custom_call.1} parent=5 // pred_check
        %p81 = pneg %p80
      $region14: #{tpu_custom_call.1} parent=5 // pred_check_branch
        %83 = sbr.rel (%p81) target = $region16
      $region15: #{tpu_custom_call.1} parent=5 // pred_region
        // Predicated region
        $region17: #{tpu_custom_call.1} parent=15 // pred_check
          %p84 = pneg %p33
        $region18: #{tpu_custom_call.1} parent=15 // pred_check_branch
          %86 = sbr.rel (%p84) target = $region20
        $region19: #{tpu_custom_call.1} parent=15 // pred_region
          %s87 = sand.u32 %s23, 1
          %s88 = scalar_lea.sflag [#allocation3], %s87
          %s89 = sand.u32 %s23, 1
          %s90 = smul.addr %s89, 8
          %s91 = scalar_lea.vmem [#allocation2], %s90
          %s93 = ssub.s32 128, 128
          %94 = vsyncadd %s88, %s93
          %s95 = smul.addr %s13, 128
          %s96 = scalar_lea.hbm %s0, %s95
          %s98 = sshll.u32 %s91, 4
          %s99 = int_to_ptr.vmem [resolvable:$true] %s98
          %101 = dma.hbm_to_vmem [thread:$0]  %s96, 128, %s99, %s88
        $region20: #{tpu_custom_call.1} parent=15 // pred_fallthru
          _
      $region16: #{tpu_custom_call.1} parent=5 // pred_fallthru
        _
      %p102 = scmp.le.s32.totalorder 1, %s13
      %p103 = scmp.lt.s32.totalorder %s13, 3
      %p104 = pnand %p102, %p103
      %p105 = pneg %p104
      // Predicated region
      $region21: #{tpu_custom_call.1} parent=5 // pred_check
        _
      $region22: #{tpu_custom_call.1} parent=5 // pred_check_branch
        %107 = sbr.rel (%p104) target = $region24
      $region23: #{tpu_custom_call.1} parent=5 // pred_region
        %s108 = ssub.s32 %s13, 1
        %s109 = sand.u32 %s26, 1
        %s110 = scalar_lea.sflag [#allocation3], %s109
        %s111 = sand.u32 %s26, 1
        %s112 = smul.addr %s111, 8
        %s113 = scalar_lea.vmem [#allocation2], %s112
        // Predicated region
        $region25: #{tpu_custom_call.1} parent=23 // pred_check
          %p114 = pneg %p39
        $region26: #{tpu_custom_call.1} parent=23 // pred_check_branch
          %116 = sbr.rel (%p114) target = $region28
        $region27: #{tpu_custom_call.1} parent=23 // pred_region
          %117 = dma.done %s110, 128
        $region28: #{tpu_custom_call.1} parent=23 // pred_fallthru
          _
        %s118 = sand.u32 %s26, 1
        %s119 = scalar_lea.sflag [#allocation3], %s118
        %s120 = sand.u32 %s26, 1
        %s121 = smul.addr %s120, 8
        %s122 = scalar_lea.vmem [#allocation2], %s121
        %p123 = pneg %p39
        %p124 = pneg %p36
        %p125 = pneg %p65
        %p126 = pneg %p62
        %s127 = sand.u32 %s52, 1
        %s128 = scalar_lea.sflag [#allocation4], %s127
        %s129 = sand.u32 %s52, 1
        %s130 = smul.addr %s129, 8
        %s131 = scalar_lea.vmem [#allocation5], %s130
        %v132 = vld [vmem:[%s113] sm:$0xff]
        %133 = vmatprep.subr.mxu0 0.0
        %134 = vmatpush1.xpose.msra.mxu0 %v132
        %135 = vmatprep.subr.mxu0 0.0
        %136 = vmatpush1.xpose.msra.mxu0 0.0
        %137 = vmatprep.subr.mxu0 0.0
        %138 = vmatpush1.xpose.msra.mxu0 0.0
        %139 = vmatprep.subr.mxu0 0.0
        %140 = vmatpush1.xpose.msra.mxu0 0.0
        %141 = vmatprep.subr.mxu0 0.0
        %142 = vmatpush1.xpose.msra.mxu0 0.0
        %143 = vmatprep.subr.mxu0 0.0
        %144 = vmatpush1.xpose.msra.mxu0 0.0
        %145 = vmatprep.subr.mxu0 0.0
        %146 = vmatpush1.xpose.msra.mxu0 0.0
        %147 = vmatprep.subr.mxu0 0.0
        %148 = vmatpush1.xpose.msra.mxu0 0.0
        %149 = vmatprep.subr.mxu0 0.0
        %150 = vmatpush1.xpose.msra.mxu0 0.0
        %151 = vmatprep.subr.mxu0 0.0
        %152 = vmatpush1.xpose.msra.mxu0 0.0
        %153 = vmatprep.subr.mxu0 0.0
        %154 = vmatpush1.xpose.msra.mxu0 0.0
        %155 = vmatprep.subr.mxu0 0.0
        %156 = vmatpush1.xpose.msra.mxu0 0.0
        %157 = vmatprep.subr.mxu0 0.0
        %158 = vmatpush1.xpose.msra.mxu0 0.0
        %159 = vmatprep.subr.mxu0 0.0
        %160 = vmatpush1.xpose.msra.mxu0 0.0
        %161 = vmatprep.subr.mxu0 0.0
        %162 = vmatpush1.xpose.msra.mxu0 0.0
        %163 = vmatprep.subr.mxu0 0.0
        %164 = vmatpush1.xpose.msra.mxu0 0.0
        %165 = vmatprep.subr.mxu0 0.0
        %166 = vmatpush1.xpose.msra.mxu0 0.0
        %167 = vmatprep.subr.mxu0 0.0
        %168 = vmatpush1.xpose.msra.mxu0 0.0
        %169 = vmatprep.subr.mxu0 0.0
        %170 = vmatpush1.xpose.msra.mxu0 0.0
        %171 = vmatprep.subr.mxu0 0.0
        %172 = vmatpush1.xpose.msra.mxu0 0.0
        %173 = vmatprep.subr.mxu0 0.0
        %174 = vmatpush1.xpose.msra.mxu0 0.0
        %175 = vmatprep.subr.mxu0 0.0
        %176 = vmatpush1.xpose.msra.mxu0 0.0
        %177 = vmatprep.subr.mxu0 0.0
        %178 = vmatpush1.xpose.msra.mxu0 0.0
        %179 = vmatprep.subr.mxu0 0.0
        %180 = vmatpush1.xpose.msra.mxu0 0.0
        %181 = vmatprep.subr.mxu0 0.0
        %182 = vmatpush1.xpose.msra.mxu0 0.0
        %183 = vmatprep.subr.mxu0 0.0
        %184 = vmatpush1.xpose.msra.mxu0 0.0
        %185 = vmatprep.subr.mxu0 0.0
        %186 = vmatpush1.xpose.msra.mxu0 0.0
        %187 = vmatprep.subr.mxu0 0.0
        %188 = vmatpush1.xpose.msra.mxu0 0.0
        %189 = vmatprep.subr.mxu0 0.0
        %190 = vmatpush1.xpose.msra.mxu0 0.0
        %191 = vmatprep.subr.mxu0 0.0
        %192 = vmatpush1.xpose.msra.mxu0 0.0
        %193 = vmatprep.subr.mxu0 0.0
        %194 = vmatpush1.xpose.msra.mxu0 0.0
        %195 = vmatprep.subr.mxu0 0.0
        %196 = vmatpush1.xpose.msra.mxu0 0.0
        %197 = vmatprep.mubr.f32.mxu0 0.0
        %198 = vmatmul.mubr.f32.gmra.mrb[0].mxu0 %v132
        %v199 = vpop.f32.mrb[0].mxu0
        %v200 = vadd.f32 0.0, %v199
        %v201 = vpop.f32.mrb[0].mxu0
        %202 = vdwg.mxu0
        %v203 = vmul.f32 %v200, %v200
        %vm204 = vcmask 64512
        %v205 = vsel %vm204, %v203, 0.0
        %206 = vadd.xlane.f32.xlu0 %v205
        %v207 = vpop.xlane.xlu0 %206
        %v208 = vrot.slane %v207, 4
        %v209 = vadd.f32 %v207, %v208
        %v210 = vrot.slane %v209, 2
        %v211 = vadd.f32 %v209, %v210
        %v212 = vrot.slane %v211, 1
        %v213 = vadd.f32 %v211, %v212
        %s214 = vtos %v213
        %s215 = sadd.f32 %s214, 1e-30
        %v216 = vstv %s215
        %v217 = vrsqrt.pop %v216
        %s218 = vtos %v217
        %v219 = vstv %s218
        %v220 = vmul.f32 %v200, %v219
        %v222 = vsel %vm204, %v220, 0
        %224 = vmatprep.subr.mxu0 0.0
        %225 = vmatpush1.msra.mxu0 %v220
        %226 = vmatprep.subr.mxu0 0.0
        %227 = vmatpush1.msra.mxu0 0.0
        %228 = vmatprep.subr.mxu0 0.0
        %229 = vmatpush1.msra.mxu0 0.0
        %230 = vmatprep.subr.mxu0 0.0
        %231 = vmatpush1.msra.mxu0 0.0
        %232 = vmatprep.subr.mxu0 0.0
        %233 = vmatpush1.msra.mxu0 0.0
        %234 = vmatprep.subr.mxu0 0.0
        %235 = vmatpush1.msra.mxu0 0.0
        %236 = vmatprep.subr.mxu0 0.0
        %237 = vmatpush1.msra.mxu0 0.0
        %238 = vmatprep.subr.mxu0 0.0
        %239 = vmatpush1.msra.mxu0 0.0
        %240 = vmatprep.subr.mxu0 0.0
        %241 = vmatpush1.msra.mxu0 0.0
        %242 = vmatprep.subr.mxu0 0.0
        %243 = vmatpush1.msra.mxu0 0.0
        %244 = vmatprep.subr.mxu0 0.0
        %245 = vmatpush1.msra.mxu0 0.0
        %246 = vmatprep.subr.mxu0 0.0
        %247 = vmatpush1.msra.mxu0 0.0
        %248 = vmatprep.subr.mxu0 0.0
        %249 = vmatpush1.msra.mxu0 0.0
        %250 = vmatprep.subr.mxu0 0.0
        %251 = vmatpush1.msra.mxu0 0.0
        %252 = vmatprep.subr.mxu0 0.0
        %253 = vmatpush1.msra.mxu0 0.0
        %254 = vmatprep.subr.mxu0 0.0
        %255 = vmatpush1.msra.mxu0 0.0
        %256 = vmatprep.subr.mxu0 0.0
        %257 = vmatpush1.msra.mxu0 0.0
        %258 = vmatprep.subr.mxu0 0.0
        %259 = vmatpush1.msra.mxu0 0.0
        %260 = vmatprep.subr.mxu0 0.0
        %261 = vmatpush1.msra.mxu0 0.0
        %262 = vmatprep.subr.mxu0 0.0
        %263 = vmatpush1.msra.mxu0 0.0
        %264 = vmatprep.subr.mxu0 0.0
        %265 = vmatpush1.msra.mxu0 0.0
        %266 = vmatprep.subr.mxu0 0.0
        %267 = vmatpush1.msra.mxu0 0.0
        %268 = vmatprep.subr.mxu0 0.0
        %269 = vmatpush1.msra.mxu0 0.0
        %270 = vmatprep.subr.mxu0 0.0
        %271 = vmatpush1.msra.mxu0 0.0
        %272 = vmatprep.subr.mxu0 0.0
        %273 = vmatpush1.msra.mxu0 0.0
        %274 = vmatprep.subr.mxu0 0.0
        %275 = vmatpush1.msra.mxu0 0.0
        %276 = vmatprep.subr.mxu0 0.0
        %277 = vmatpush1.msra.mxu0 0.0
        %278 = vmatprep.subr.mxu0 0.0
        %279 = vmatpush1.msra.mxu0 0.0
        %280 = vmatprep.subr.mxu0 0.0
        %281 = vmatpush1.msra.mxu0 0.0
        %282 = vmatprep.subr.mxu0 0.0
        %283 = vmatpush1.msra.mxu0 0.0
        %284 = vmatprep.subr.mxu0 0.0
        %285 = vmatpush1.msra.mxu0 0.0
        %286 = vmatprep.subr.mxu0 0.0
        %287 = vmatpush1.msra.mxu0 0.0
        %288 = vmatprep.mubr.f32.mxu0 0.0
        %289 = vmatmul.mubr.f32.gmra.mrb[0].mxu0 %v222
        %v290 = vpop.f32.mrb[0].mxu0
        %v291 = vadd.f32 0.0, %v290
        %v292 = vpop.f32.mrb[0].mxu0
        %293 = vdwg.mxu0
        %v294 = vmul.f32 %v291, %v291
        %v295 = vsel %vm204, %v294, 0.0
        %296 = vadd.xlane.f32.xlu0 %v295
        %v297 = vpop.xlane.xlu0 %296
        %v298 = vrot.slane %v297, 4
        %v299 = vadd.f32 %v297, %v298
        %v300 = vrot.slane %v299, 2
        %v301 = vadd.f32 %v299, %v300
        %v302 = vrot.slane %v301, 1
        %v303 = vadd.f32 %v301, %v302
        %s304 = vtos %v303
        %s305 = sadd.f32 %s304, 1e-30
        %v306 = vstv %s305
        %v307 = vrsqrt.pop %v306
        %s308 = vtos %v307
        %v309 = vstv %s308
        %v310 = vmul.f32 %v291, %v309
        %v312 = vsel %vm204, %v310, 0
        %314 = vmatprep.subr.mxu0 0.0
        %315 = vmatpush1.msra.mxu0 %v310
        %316 = vmatprep.subr.mxu0 0.0
        %317 = vmatpush1.msra.mxu0 0.0
        %318 = vmatprep.subr.mxu0 0.0
        %319 = vmatpush1.msra.mxu0 0.0
        %320 = vmatprep.subr.mxu0 0.0
        %321 = vmatpush1.msra.mxu0 0.0
        %322 = vmatprep.subr.mxu0 0.0
        %323 = vmatpush1.msra.mxu0 0.0
        %324 = vmatprep.subr.mxu0 0.0
        %325 = vmatpush1.msra.mxu0 0.0
        %326 = vmatprep.subr.mxu0 0.0
        %327 = vmatpush1.msra.mxu0 0.0
        %328 = vmatprep.subr.mxu0 0.0
        %329 = vmatpush1.msra.mxu0 0.0
        %330 = vmatprep.subr.mxu0 0.0
        %331 = vmatpush1.msra.mxu0 0.0
        %332 = vmatprep.subr.mxu0 0.0
        %333 = vmatpush1.msra.mxu0 0.0
        %334 = vmatprep.subr.mxu0 0.0
        %335 = vmatpush1.msra.mxu0 0.0
        %336 = vmatprep.subr.mxu0 0.0
        %337 = vmatpush1.msra.mxu0 0.0
        %338 = vmatprep.subr.mxu0 0.0
        %339 = vmatpush1.msra.mxu0 0.0
        %340 = vmatprep.subr.mxu0 0.0
        %341 = vmatpush1.msra.mxu0 0.0
        %342 = vmatprep.subr.mxu0 0.0
        %343 = vmatpush1.msra.mxu0 0.0
        %344 = vmatprep.subr.mxu0 0.0
        %345 = vmatpush1.msra.mxu0 0.0
        %346 = vmatprep.subr.mxu0 0.0
        %347 = vmatpush1.msra.mxu0 0.0
        %348 = vmatprep.subr.mxu0 0.0
        %349 = vmatpush1.msra.mxu0 0.0
        %350 = vmatprep.subr.mxu0 0.0
        %351 = vmatpush1.msra.mxu0 0.0
        %352 = vmatprep.subr.mxu0 0.0
        %353 = vmatpush1.msra.mxu0 0.0
        %354 = vmatprep.subr.mxu0 0.0
        %355 = vmatpush1.msra.mxu0 0.0
        %356 = vmatprep.subr.mxu0 0.0
        %357 = vmatpush1.msra.mxu0 0.0
        %358 = vmatprep.subr.mxu0 0.0
        %359 = vmatpush1.msra.mxu0 0.0
        %360 = vmatprep.subr.mxu0 0.0
        %361 = vmatpush1.msra.mxu0 0.0
        %362 = vmatprep.subr.mxu0 0.0
        %363 = vmatpush1.msra.mxu0 0.0
        %364 = vmatprep.subr.mxu0 0.0
        %365 = vmatpush1.msra.mxu0 0.0
        %366 = vmatprep.subr.mxu0 0.0
        %367 = vmatpush1.msra.mxu0 0.0
        %368 = vmatprep.subr.mxu0 0.0
        %369 = vmatpush1.msra.mxu0 0.0
        %370 = vmatprep.subr.mxu0 0.0
        %371 = vmatpush1.msra.mxu0 0.0
        %372 = vmatprep.subr.mxu0 0.0
        %373 = vmatpush1.msra.mxu0 0.0
        %374 = vmatprep.subr.mxu0 0.0
        %375 = vmatpush1.msra.mxu0 0.0
        %376 = vmatprep.subr.mxu0 0.0
        %377 = vmatpush1.msra.mxu0 0.0
        %378 = vmatprep.mubr.f32.mxu0 0.0
        %379 = vmatmul.mubr.f32.gmra.mrb[0].mxu0 %v312
        %v380 = vpop.f32.mrb[0].mxu0
        %v381 = vadd.f32 0.0, %v380
        %v382 = vpop.f32.mrb[0].mxu0
        %383 = vdwg.mxu0
        %v384 = vmul.f32 %v381, %v381
        %v385 = vsel %vm204, %v384, 0.0
        %386 = vadd.xlane.f32.xlu0 %v385
        %v387 = vpop.xlane.xlu0 %386
        %v388 = vrot.slane %v387, 4
        %v389 = vadd.f32 %v387, %v388
        %v390 = vrot.slane %v389, 2
        %v391 = vadd.f32 %v389, %v390
        %v392 = vrot.slane %v391, 1
        %v393 = vadd.f32 %v391, %v392
        %s394 = vtos %v393
        %s395 = sadd.f32 %s394, 1e-30
        %v396 = vstv %s395
        %v397 = vrsqrt.pop %v396
        %s398 = vtos %v397
        %v399 = vstv %s398
        %v400 = vmul.f32 %v381, %v399
        %v402 = vsel %vm204, %v400, 0
        %404 = vmatprep.subr.mxu0 0.0
        %405 = vmatpush1.msra.mxu0 %v400
        %406 = vmatprep.subr.mxu0 0.0
        %407 = vmatpush1.msra.mxu0 0.0
        %408 = vmatprep.subr.mxu0 0.0
        %409 = vmatpush1.msra.mxu0 0.0
        %410 = vmatprep.subr.mxu0 0.0
        %411 = vmatpush1.msra.mxu0 0.0
        %412 = vmatprep.subr.mxu0 0.0
        %413 = vmatpush1.msra.mxu0 0.0
        %414 = vmatprep.subr.mxu0 0.0
        %415 = vmatpush1.msra.mxu0 0.0
        %416 = vmatprep.subr.mxu0 0.0
        %417 = vmatpush1.msra.mxu0 0.0
        %418 = vmatprep.subr.mxu0 0.0
        %419 = vmatpush1.msra.mxu0 0.0
        %420 = vmatprep.subr.mxu0 0.0
        %421 = vmatpush1.msra.mxu0 0.0
        %422 = vmatprep.subr.mxu0 0.0
        %423 = vmatpush1.msra.mxu0 0.0
        %424 = vmatprep.subr.mxu0 0.0
        %425 = vmatpush1.msra.mxu0 0.0
        %426 = vmatprep.subr.mxu0 0.0
        %427 = vmatpush1.msra.mxu0 0.0
        %428 = vmatprep.subr.mxu0 0.0
        %429 = vmatpush1.msra.mxu0 0.0
        %430 = vmatprep.subr.mxu0 0.0
        %431 = vmatpush1.msra.mxu0 0.0
        %432 = vmatprep.subr.mxu0 0.0
        %433 = vmatpush1.msra.mxu0 0.0
        %434 = vmatprep.subr.mxu0 0.0
        %435 = vmatpush1.msra.mxu0 0.0
        %436 = vmatprep.subr.mxu0 0.0
        %437 = vmatpush1.msra.mxu0 0.0
        %438 = vmatprep.subr.mxu0 0.0
        %439 = vmatpush1.msra.mxu0 0.0
        %440 = vmatprep.subr.mxu0 0.0
        %441 = vmatpush1.msra.mxu0 0.0
        %442 = vmatprep.subr.mxu0 0.0
        %443 = vmatpush1.msra.mxu0 0.0
        %444 = vmatprep.subr.mxu0 0.0
        %445 = vmatpush1.msra.mxu0 0.0
        %446 = vmatprep.subr.mxu0 0.0
        %447 = vmatpush1.msra.mxu0 0.0
        %448 = vmatprep.subr.mxu0 0.0
        %449 = vmatpush1.msra.mxu0 0.0
        %450 = vmatprep.subr.mxu0 0.0
        %451 = vmatpush1.msra.mxu0 0.0
        %452 = vmatprep.subr.mxu0 0.0
        %453 = vmatpush1.msra.mxu0 0.0
        %454 = vmatprep.subr.mxu0 0.0
        %455 = vmatpush1.msra.mxu0 0.0
        %456 = vmatprep.subr.mxu0 0.0
        %457 = vmatpush1.msra.mxu0 0.0
        %458 = vmatprep.subr.mxu0 0.0
        %459 = vmatpush1.msra.mxu0 0.0
        %460 = vmatprep.subr.mxu0 0.0
        %461 = vmatpush1.msra.mxu0 0.0
        %462 = vmatprep.subr.mxu0 0.0
        %463 = vmatpush1.msra.mxu0 0.0
        %464 = vmatprep.subr.mxu0 0.0
        %465 = vmatpush1.msra.mxu0 0.0
        %466 = vmatprep.subr.mxu0 0.0
        %467 = vmatpush1.msra.mxu0 0.0
        %468 = vmatprep.mubr.f32.mxu0 0.0
        %469 = vmatmul.mubr.f32.gmra.mrb[0].mxu0 %v402
        %v470 = vpop.f32.mrb[0].mxu0
        %v471 = vadd.f32 0.0, %v470
        %v472 = vpop.f32.mrb[0].mxu0
        %473 = vdwg.mxu0
        %v474 = vmul.f32 %v471, %v471
        %v475 = vsel %vm204, %v474, 0.0
        %476 = vadd.xlane.f32.xlu0 %v475
        %v477 = vpop.xlane.xlu0 %476
        %v478 = vrot.slane %v477, 4
        %v479 = vadd.f32 %v477, %v478
        %v480 = vrot.slane %v479, 2
        %v481 = vadd.f32 %v479, %v480
        %v482 = vrot.slane %v481, 1
        %v483 = vadd.f32 %v481, %v482
        %s484 = vtos %v483
        %s485 = sadd.f32 %s484, 1e-30
        %v486 = vstv %s485
        %v487 = vrsqrt.pop %v486
        %s488 = vtos %v487
        %v489 = vstv %s488
        %v490 = vmul.f32 %v471, %v489
        %v492 = vsel %vm204, %v490, 0
        %494 = vmatprep.subr.mxu0 0.0
        %495 = vmatpush1.msra.mxu0 %v490
        %496 = vmatprep.subr.mxu0 0.0
        %497 = vmatpush1.msra.mxu0 0.0
        %498 = vmatprep.subr.mxu0 0.0
        %499 = vmatpush1.msra.mxu0 0.0
        %500 = vmatprep.subr.mxu0 0.0
        %501 = vmatpush1.msra.mxu0 0.0
        %502 = vmatprep.subr.mxu0 0.0
        %503 = vmatpush1.msra.mxu0 0.0
        %504 = vmatprep.subr.mxu0 0.0
        %505 = vmatpush1.msra.mxu0 0.0
        %506 = vmatprep.subr.mxu0 0.0
        %507 = vmatpush1.msra.mxu0 0.0
        %508 = vmatprep.subr.mxu0 0.0
        %509 = vmatpush1.msra.mxu0 0.0
        %510 = vmatprep.subr.mxu0 0.0
        %511 = vmatpush1.msra.mxu0 0.0
        %512 = vmatprep.subr.mxu0 0.0
        %513 = vmatpush1.msra.mxu0 0.0
        %514 = vmatprep.subr.mxu0 0.0
        %515 = vmatpush1.msra.mxu0 0.0
        %516 = vmatprep.subr.mxu0 0.0
        %517 = vmatpush1.msra.mxu0 0.0
        %518 = vmatprep.subr.mxu0 0.0
        %519 = vmatpush1.msra.mxu0 0.0
        %520 = vmatprep.subr.mxu0 0.0
        %521 = vmatpush1.msra.mxu0 0.0
        %522 = vmatprep.subr.mxu0 0.0
        %523 = vmatpush1.msra.mxu0 0.0
        %524 = vmatprep.subr.mxu0 0.0
        %525 = vmatpush1.msra.mxu0 0.0
        %526 = vmatprep.subr.mxu0 0.0
        %527 = vmatpush1.msra.mxu0 0.0
        %528 = vmatprep.subr.mxu0 0.0
        %529 = vmatpush1.msra.mxu0 0.0
        %530 = vmatprep.subr.mxu0 0.0
        %531 = vmatpush1.msra.mxu0 0.0
        %532 = vmatprep.subr.mxu0 0.0
        %533 = vmatpush1.msra.mxu0 0.0
        %534 = vmatprep.subr.mxu0 0.0
        %535 = vmatpush1.msra.mxu0 0.0
        %536 = vmatprep.subr.mxu0 0.0
        %537 = vmatpush1.msra.mxu0 0.0
        %538 = vmatprep.subr.mxu0 0.0
        %539 = vmatpush1.msra.mxu0 0.0
        %540 = vmatprep.subr.mxu0 0.0
        %541 = vmatpush1.msra.mxu0 0.0
        %542 = vmatprep.subr.mxu0 0.0
        %543 = vmatpush1.msra.mxu0 0.0
        %544 = vmatprep.subr.mxu0 0.0
        %545 = vmatpush1.msra.mxu0 0.0
        %546 = vmatprep.subr.mxu0 0.0
        %547 = vmatpush1.msra.mxu0 0.0
        %548 = vmatprep.subr.mxu0 0.0
        %549 = vmatpush1.msra.mxu0 0.0
        %550 = vmatprep.subr.mxu0 0.0
        %551 = vmatpush1.msra.mxu0 0.0
        %552 = vmatprep.subr.mxu0 0.0
        %553 = vmatpush1.msra.mxu0 0.0
        %554 = vmatprep.subr.mxu0 0.0
        %555 = vmatpush1.msra.mxu0 0.0
        %556 = vmatprep.subr.mxu0 0.0
        %557 = vmatpush1.msra.mxu0 0.0
        %558 = vmatprep.mubr.f32.mxu0 0.0
        %559 = vmatmul.mubr.f32.gmra.mrb[0].mxu0 %v492
        %v560 = vpop.f32.mrb[0].mxu0
        %v561 = vadd.f32 0.0, %v560
        %v562 = vpop.f32.mrb[0].mxu0
        %563 = vdwg.mxu0
        %v564 = vmul.f32 %v561, %v561
        %v565 = vsel %vm204, %v564, 0.0
        %566 = vadd.xlane.f32.xlu0 %v565
        %v567 = vpop.xlane.xlu0 %566
        %v568 = vrot.slane %v567, 4
        %v569 = vadd.f32 %v567, %v568
        %v570 = vrot.slane %v569, 2
        %v571 = vadd.f32 %v569, %v570
        %v572 = vrot.slane %v571, 1
        %v573 = vadd.f32 %v571, %v572
        %s574 = vtos %v573
        %s575 = sadd.f32 %s574, 1e-30
        %v576 = vstv %s575
        %v577 = vrsqrt.pop %v576
        %s578 = vtos %v577
        %v579 = vstv %s578
        %v580 = vmul.f32 %v561, %v579
        %v582 = vsel %vm204, %v580, 0
        %584 = vmatprep.subr.mxu0 0.0
        %585 = vmatpush1.msra.mxu0 %v580
        %586 = vmatprep.subr.mxu0 0.0
        %587 = vmatpush1.msra.mxu0 0.0
        %588 = vmatprep.subr.mxu0 0.0
        %589 = vmatpush1.msra.mxu0 0.0
        %590 = vmatprep.subr.mxu0 0.0
        %591 = vmatpush1.msra.mxu0 0.0
        %592 = vmatprep.subr.mxu0 0.0
        %593 = vmatpush1.msra.mxu0 0.0
        %594 = vmatprep.subr.mxu0 0.0
        %595 = vmatpush1.msra.mxu0 0.0
        %596 = vmatprep.subr.mxu0 0.0
        %597 = vmatpush1.msra.mxu0 0.0
        %598 = vmatprep.subr.mxu0 0.0
        %599 = vmatpush1.msra.mxu0 0.0
        %600 = vmatprep.subr.mxu0 0.0
        %601 = vmatpush1.msra.mxu0 0.0
        %602 = vmatprep.subr.mxu0 0.0
        %603 = vmatpush1.msra.mxu0 0.0
        %604 = vmatprep.subr.mxu0 0.0
        %605 = vmatpush1.msra.mxu0 0.0
        %606 = vmatprep.subr.mxu0 0.0
        %607 = vmatpush1.msra.mxu0 0.0
        %608 = vmatprep.subr.mxu0 0.0
        %609 = vmatpush1.msra.mxu0 0.0
        %610 = vmatprep.subr.mxu0 0.0
        %611 = vmatpush1.msra.mxu0 0.0
        %612 = vmatprep.subr.mxu0 0.0
        %613 = vmatpush1.msra.mxu0 0.0
        %614 = vmatprep.subr.mxu0 0.0
        %615 = vmatpush1.msra.mxu0 0.0
        %616 = vmatprep.subr.mxu0 0.0
        %617 = vmatpush1.msra.mxu0 0.0
        %618 = vmatprep.subr.mxu0 0.0
        %619 = vmatpush1.msra.mxu0 0.0
        %620 = vmatprep.subr.mxu0 0.0
        %621 = vmatpush1.msra.mxu0 0.0
        %622 = vmatprep.subr.mxu0 0.0
        %623 = vmatpush1.msra.mxu0 0.0
        %624 = vmatprep.subr.mxu0 0.0
        %625 = vmatpush1.msra.mxu0 0.0
        %626 = vmatprep.subr.mxu0 0.0
        %627 = vmatpush1.msra.mxu0 0.0
        %628 = vmatprep.subr.mxu0 0.0
        %629 = vmatpush1.msra.mxu0 0.0
        %630 = vmatprep.subr.mxu0 0.0
        %631 = vmatpush1.msra.mxu0 0.0
        %632 = vmatprep.subr.mxu0 0.0
        %633 = vmatpush1.msra.mxu0 0.0
        %634 = vmatprep.subr.mxu0 0.0
        %635 = vmatpush1.msra.mxu0 0.0
        %636 = vmatprep.subr.mxu0 0.0
        %637 = vmatpush1.msra.mxu0 0.0
        %638 = vmatprep.subr.mxu0 0.0
        %639 = vmatpush1.msra.mxu0 0.0
        %640 = vmatprep.subr.mxu0 0.0
        %641 = vmatpush1.msra.mxu0 0.0
        %642 = vmatprep.subr.mxu0 0.0
        %643 = vmatpush1.msra.mxu0 0.0
        %644 = vmatprep.subr.mxu0 0.0
        %645 = vmatpush1.msra.mxu0 0.0
        %646 = vmatprep.subr.mxu0 0.0
        %647 = vmatpush1.msra.mxu0 0.0
        %648 = vmatprep.mubr.f32.mxu0 0.0
        %649 = vmatmul.mubr.f32.gmra.mrb[0].mxu0 %v582
        %v650 = vpop.f32.mrb[0].mxu0
        %v651 = vadd.f32 0.0, %v650
        %v652 = vpop.f32.mrb[0].mxu0
        %653 = vdwg.mxu0
        %v654 = vmul.f32 %v651, %v651
        %v655 = vsel %vm204, %v654, 0.0
        %656 = vadd.xlane.f32.xlu0 %v655
        %v657 = vpop.xlane.xlu0 %656
        %v658 = vrot.slane %v657, 4
        %v659 = vadd.f32 %v657, %v658
        %v660 = vrot.slane %v659, 2
        %v661 = vadd.f32 %v659, %v660
        %v662 = vrot.slane %v661, 1
        %v663 = vadd.f32 %v661, %v662
        %s664 = vtos %v663
        %s665 = sadd.f32 %s664, 1e-30
        %v666 = vstv %s665
        %v667 = vrsqrt.pop %v666
        %s668 = vtos %v667
        %v669 = vstv %s668
        %v670 = vmul.f32 %v651, %v669
        %v672 = vsel %vm204, %v670, 0
        %674 = vmatprep.subr.mxu0 0.0
        %675 = vmatpush1.msra.mxu0 %v670
        %676 = vmatprep.subr.mxu0 0.0
        %677 = vmatpush1.msra.mxu0 0.0
        %678 = vmatprep.subr.mxu0 0.0
        %679 = vmatpush1.msra.mxu0 0.0
        %680 = vmatprep.subr.mxu0 0.0
        %681 = vmatpush1.msra.mxu0 0.0
        %682 = vmatprep.subr.mxu0 0.0
        %683 = vmatpush1.msra.mxu0 0.0
        %684 = vmatprep.subr.mxu0 0.0
        %685 = vmatpush1.msra.mxu0 0.0
        %686 = vmatprep.subr.mxu0 0.0
        %687 = vmatpush1.msra.mxu0 0.0
        %688 = vmatprep.subr.mxu0 0.0
        %689 = vmatpush1.msra.mxu0 0.0
        %690 = vmatprep.subr.mxu0 0.0
        %691 = vmatpush1.msra.mxu0 0.0
        %692 = vmatprep.subr.mxu0 0.0
        %693 = vmatpush1.msra.mxu0 0.0
        %694 = vmatprep.subr.mxu0 0.0
        %695 = vmatpush1.msra.mxu0 0.0
        %696 = vmatprep.subr.mxu0 0.0
        %697 = vmatpush1.msra.mxu0 0.0
        %698 = vmatprep.subr.mxu0 0.0
        %699 = vmatpush1.msra.mxu0 0.0
        %700 = vmatprep.subr.mxu0 0.0
        %701 = vmatpush1.msra.mxu0 0.0
        %702 = vmatprep.subr.mxu0 0.0
        %703 = vmatpush1.msra.mxu0 0.0
        %704 = vmatprep.subr.mxu0 0.0
        %705 = vmatpush1.msra.mxu0 0.0
        %706 = vmatprep.subr.mxu0 0.0
        %707 = vmatpush1.msra.mxu0 0.0
        %708 = vmatprep.subr.mxu0 0.0
        %709 = vmatpush1.msra.mxu0 0.0
        %710 = vmatprep.subr.mxu0 0.0
        %711 = vmatpush1.msra.mxu0 0.0
        %712 = vmatprep.subr.mxu0 0.0
        %713 = vmatpush1.msra.mxu0 0.0
        %714 = vmatprep.subr.mxu0 0.0
        %715 = vmatpush1.msra.mxu0 0.0
        %716 = vmatprep.subr.mxu0 0.0
        %717 = vmatpush1.msra.mxu0 0.0
        %718 = vmatprep.subr.mxu0 0.0
        %719 = vmatpush1.msra.mxu0 0.0
        %720 = vmatprep.subr.mxu0 0.0
        %721 = vmatpush1.msra.mxu0 0.0
        %722 = vmatprep.subr.mxu0 0.0
        %723 = vmatpush1.msra.mxu0 0.0
        %724 = vmatprep.subr.mxu0 0.0
        %725 = vmatpush1.msra.mxu0 0.0
        %726 = vmatprep.subr.mxu0 0.0
        %727 = vmatpush1.msra.mxu0 0.0
        %728 = vmatprep.subr.mxu0 0.0
        %729 = vmatpush1.msra.mxu0 0.0
        %730 = vmatprep.subr.mxu0 0.0
        %731 = vmatpush1.msra.mxu0 0.0
        %732 = vmatprep.subr.mxu0 0.0
        %733 = vmatpush1.msra.mxu0 0.0
        %734 = vmatprep.subr.mxu0 0.0
        %735 = vmatpush1.msra.mxu0 0.0
        %736 = vmatprep.subr.mxu0 0.0
        %737 = vmatpush1.msra.mxu0 0.0
        %738 = vmatprep.mubr.f32.mxu0 0.0
        %739 = vmatmul.mubr.f32.gmra.mrb[0].mxu0 %v672
        %v740 = vpop.f32.mrb[0].mxu0
        %v741 = vadd.f32 0.0, %v740
        %v742 = vpop.f32.mrb[0].mxu0
        %743 = vdwg.mxu0
        %v744 = vmul.f32 %v741, %v741
        %v745 = vsel %vm204, %v744, 0.0
        %746 = vadd.xlane.f32.xlu0 %v745
        %v747 = vpop.xlane.xlu0 %746
        %v748 = vrot.slane %v747, 4
        %v749 = vadd.f32 %v747, %v748
        %v750 = vrot.slane %v749, 2
        %v751 = vadd.f32 %v749, %v750
        %v752 = vrot.slane %v751, 1
        %v753 = vadd.f32 %v751, %v752
        %s754 = vtos %v753
        %s755 = sadd.f32 %s754, 1e-30
        %v756 = vstv %s755
        %v757 = vrsqrt.pop %v756
        %s758 = vtos %v757
        %v759 = vstv %s758
        %v760 = vmul.f32 %v741, %v759
        %v762 = vsel %vm204, %v760, 0
        %764 = vmatprep.subr.mxu0 0.0
        %765 = vmatpush1.msra.mxu0 %v760
        %766 = vmatprep.subr.mxu0 0.0
        %767 = vmatpush1.msra.mxu0 0.0
        %768 = vmatprep.subr.mxu0 0.0
        %769 = vmatpush1.msra.mxu0 0.0
        %770 = vmatprep.subr.mxu0 0.0
        %771 = vmatpush1.msra.mxu0 0.0
        %772 = vmatprep.subr.mxu0 0.0
        %773 = vmatpush1.msra.mxu0 0.0
        %774 = vmatprep.subr.mxu0 0.0
        %775 = vmatpush1.msra.mxu0 0.0
        %776 = vmatprep.subr.mxu0 0.0
        %777 = vmatpush1.msra.mxu0 0.0
        %778 = vmatprep.subr.mxu0 0.0
        %779 = vmatpush1.msra.mxu0 0.0
        %780 = vmatprep.subr.mxu0 0.0
        %781 = vmatpush1.msra.mxu0 0.0
        %782 = vmatprep.subr.mxu0 0.0
        %783 = vmatpush1.msra.mxu0 0.0
        %784 = vmatprep.subr.mxu0 0.0
        %785 = vmatpush1.msra.mxu0 0.0
        %786 = vmatprep.subr.mxu0 0.0
        %787 = vmatpush1.msra.mxu0 0.0
        %788 = vmatprep.subr.mxu0 0.0
        %789 = vmatpush1.msra.mxu0 0.0
        %790 = vmatprep.subr.mxu0 0.0
        %791 = vmatpush1.msra.mxu0 0.0
        %792 = vmatprep.subr.mxu0 0.0
        %793 = vmatpush1.msra.mxu0 0.0
        %794 = vmatprep.subr.mxu0 0.0
        %795 = vmatpush1.msra.mxu0 0.0
        %796 = vmatprep.subr.mxu0 0.0
        %797 = vmatpush1.msra.mxu0 0.0
        %798 = vmatprep.subr.mxu0 0.0
        %799 = vmatpush1.msra.mxu0 0.0
        %800 = vmatprep.subr.mxu0 0.0
        %801 = vmatpush1.msra.mxu0 0.0
        %802 = vmatprep.subr.mxu0 0.0
        %803 = vmatpush1.msra.mxu0 0.0
        %804 = vmatprep.subr.mxu0 0.0
        %805 = vmatpush1.msra.mxu0 0.0
        %806 = vmatprep.subr.mxu0 0.0
        %807 = vmatpush1.msra.mxu0 0.0
        %808 = vmatprep.subr.mxu0 0.0
        %809 = vmatpush1.msra.mxu0 0.0
        %810 = vmatprep.subr.mxu0 0.0
        %811 = vmatpush1.msra.mxu0 0.0
        %812 = vmatprep.subr.mxu0 0.0
        %813 = vmatpush1.msra.mxu0 0.0
        %814 = vmatprep.subr.mxu0 0.0
        %815 = vmatpush1.msra.mxu0 0.0
        %816 = vmatprep.subr.mxu0 0.0
        %817 = vmatpush1.msra.mxu0 0.0
        %818 = vmatprep.subr.mxu0 0.0
        %819 = vmatpush1.msra.mxu0 0.0
        %820 = vmatprep.subr.mxu0 0.0
        %821 = vmatpush1.msra.mxu0 0.0
        %822 = vmatprep.subr.mxu0 0.0
        %823 = vmatpush1.msra.mxu0 0.0
        %824 = vmatprep.subr.mxu0 0.0
        %825 = vmatpush1.msra.mxu0 0.0
        %826 = vmatprep.subr.mxu0 0.0
        %827 = vmatpush1.msra.mxu0 0.0
        %828 = vmatprep.mubr.f32.mxu0 0.0
        %829 = vmatmul.mubr.f32.gmra.mrb[0].mxu0 %v762
        %v830 = vpop.f32.mrb[0].mxu0
        %v831 = vadd.f32 0.0, %v830
        %v832 = vpop.f32.mrb[0].mxu0
        %833 = vdwg.mxu0
        %v834 = vmul.f32 %v831, %v831
        %v835 = vsel %vm204, %v834, 0.0
        %836 = vadd.xlane.f32.xlu0 %v835
        %v837 = vpop.xlane.xlu0 %836
        %v838 = vrot.slane %v837, 4
        %v839 = vadd.f32 %v837, %v838
        %v840 = vrot.slane %v839, 2
        %v841 = vadd.f32 %v839, %v840
        %v842 = vrot.slane %v841, 1
        %v843 = vadd.f32 %v841, %v842
        %s844 = vtos %v843
        %s845 = sadd.f32 %s844, 1e-30
        %v846 = vstv %s845
        %v847 = vrsqrt.pop %v846
        %s848 = vtos %v847
        %v849 = vstv %s848
        %v850 = vmul.f32 %v831, %v849
        %v852 = vsel %vm204, %v850, 0
        %854 = vmatprep.subr.mxu0 0.0
        %855 = vmatpush1.msra.mxu0 %v850
        %856 = vmatprep.subr.mxu0 0.0
        %857 = vmatpush1.msra.mxu0 0.0
        %858 = vmatprep.subr.mxu0 0.0
        %859 = vmatpush1.msra.mxu0 0.0
        %860 = vmatprep.subr.mxu0 0.0
        %861 = vmatpush1.msra.mxu0 0.0
        %862 = vmatprep.subr.mxu0 0.0
        %863 = vmatpush1.msra.mxu0 0.0
        %864 = vmatprep.subr.mxu0 0.0
        %865 = vmatpush1.msra.mxu0 0.0
        %866 = vmatprep.subr.mxu0 0.0
        %867 = vmatpush1.msra.mxu0 0.0
        %868 = vmatprep.subr.mxu0 0.0
        %869 = vmatpush1.msra.mxu0 0.0
        %870 = vmatprep.subr.mxu0 0.0
        %871 = vmatpush1.msra.mxu0 0.0
        %872 = vmatprep.subr.mxu0 0.0
        %873 = vmatpush1.msra.mxu0 0.0
        %874 = vmatprep.subr.mxu0 0.0
        %875 = vmatpush1.msra.mxu0 0.0
        %876 = vmatprep.subr.mxu0 0.0
        %877 = vmatpush1.msra.mxu0 0.0
        %878 = vmatprep.subr.mxu0 0.0
        %879 = vmatpush1.msra.mxu0 0.0
        %880 = vmatprep.subr.mxu0 0.0
        %881 = vmatpush1.msra.mxu0 0.0
        %882 = vmatprep.subr.mxu0 0.0
        %883 = vmatpush1.msra.mxu0 0.0
        %884 = vmatprep.subr.mxu0 0.0
        %885 = vmatpush1.msra.mxu0 0.0
        %886 = vmatprep.subr.mxu0 0.0
        %887 = vmatpush1.msra.mxu0 0.0
        %888 = vmatprep.subr.mxu0 0.0
        %889 = vmatpush1.msra.mxu0 0.0
        %890 = vmatprep.subr.mxu0 0.0
        %891 = vmatpush1.msra.mxu0 0.0
        %892 = vmatprep.subr.mxu0 0.0
        %893 = vmatpush1.msra.mxu0 0.0
        %894 = vmatprep.subr.mxu0 0.0
        %895 = vmatpush1.msra.mxu0 0.0
        %896 = vmatprep.subr.mxu0 0.0
        %897 = vmatpush1.msra.mxu0 0.0
        %898 = vmatprep.subr.mxu0 0.0
        %899 = vmatpush1.msra.mxu0 0.0
        %900 = vmatprep.subr.mxu0 0.0
        %901 = vmatpush1.msra.mxu0 0.0
        %902 = vmatprep.subr.mxu0 0.0
        %903 = vmatpush1.msra.mxu0 0.0
        %904 = vmatprep.subr.mxu0 0.0
        %905 = vmatpush1.msra.mxu0 0.0
        %906 = vmatprep.subr.mxu0 0.0
        %907 = vmatpush1.msra.mxu0 0.0
        %908 = vmatprep.subr.mxu0 0.0
        %909 = vmatpush1.msra.mxu0 0.0
        %910 = vmatprep.subr.mxu0 0.0
        %911 = vmatpush1.msra.mxu0 0.0
        %912 = vmatprep.subr.mxu0 0.0
        %913 = vmatpush1.msra.mxu0 0.0
        %914 = vmatprep.subr.mxu0 0.0
        %915 = vmatpush1.msra.mxu0 0.0
        %916 = vmatprep.subr.mxu0 0.0
        %917 = vmatpush1.msra.mxu0 0.0
        %918 = vmatprep.mubr.f32.mxu0 0.0
        %919 = vmatmul.mubr.f32.gmra.mrb[0].mxu0 %v852
        %v920 = vpop.f32.mrb[0].mxu0
        %v921 = vadd.f32 0.0, %v920
        %v922 = vpop.f32.mrb[0].mxu0
        %923 = vdwg.mxu0
        %v924 = vmul.f32 %v921, %v921
        %v925 = vsel %vm204, %v924, 0.0
        %926 = vadd.xlane.f32.xlu0 %v925
        %v927 = vpop.xlane.xlu0 %926
        %v928 = vrot.slane %v927, 4
        %v929 = vadd.f32 %v927, %v928
        %v930 = vrot.slane %v929, 2
        %v931 = vadd.f32 %v929, %v930
        %v932 = vrot.slane %v931, 1
        %v933 = vadd.f32 %v931, %v932
        %s934 = vtos %v933
        %s935 = sadd.f32 %s934, 1e-30
        %v936 = vstv %s935
        %v937 = vrsqrt.pop %v936
        %s938 = vtos %v937
        %v939 = vstv %s938
        %v940 = vmul.f32 %v921, %v939
        %v942 = vsel %vm204, %v940, 0
        %944 = vmatprep.subr.mxu0 0.0
        %945 = vmatpush1.msra.mxu0 %v940
        %946 = vmatprep.subr.mxu0 0.0
        %947 = vmatpush1.msra.mxu0 0.0
        %948 = vmatprep.subr.mxu0 0.0
        %949 = vmatpush1.msra.mxu0 0.0
        %950 = vmatprep.subr.mxu0 0.0
        %951 = vmatpush1.msra.mxu0 0.0
        %952 = vmatprep.subr.mxu0 0.0
        %953 = vmatpush1.msra.mxu0 0.0
        %954 = vmatprep.subr.mxu0 0.0
        %955 = vmatpush1.msra.mxu0 0.0
        %956 = vmatprep.subr.mxu0 0.0
        %957 = vmatpush1.msra.mxu0 0.0
        %958 = vmatprep.subr.mxu0 0.0
        %959 = vmatpush1.msra.mxu0 0.0
        %960 = vmatprep.subr.mxu0 0.0
        %961 = vmatpush1.msra.mxu0 0.0
        %962 = vmatprep.subr.mxu0 0.0
        %963 = vmatpush1.msra.mxu0 0.0
        %964 = vmatprep.subr.mxu0 0.0
        %965 = vmatpush1.msra.mxu0 0.0
        %966 = vmatprep.subr.mxu0 0.0
        %967 = vmatpush1.msra.mxu0 0.0
        %968 = vmatprep.subr.mxu0 0.0
        %969 = vmatpush1.msra.mxu0 0.0
        %970 = vmatprep.subr.mxu0 0.0
        %971 = vmatpush1.msra.mxu0 0.0
        %972 = vmatprep.subr.mxu0 0.0
        %973 = vmatpush1.msra.mxu0 0.0
        %974 = vmatprep.subr.mxu0 0.0
        %975 = vmatpush1.msra.mxu0 0.0
        %976 = vmatprep.subr.mxu0 0.0
        %977 = vmatpush1.msra.mxu0 0.0
        %978 = vmatprep.subr.mxu0 0.0
        %979 = vmatpush1.msra.mxu0 0.0
        %980 = vmatprep.subr.mxu0 0.0
        %981 = vmatpush1.msra.mxu0 0.0
        %982 = vmatprep.subr.mxu0 0.0
        %983 = vmatpush1.msra.mxu0 0.0
        %984 = vmatprep.subr.mxu0 0.0
        %985 = vmatpush1.msra.mxu0 0.0
        %986 = vmatprep.subr.mxu0 0.0
        %987 = vmatpush1.msra.mxu0 0.0
        %988 = vmatprep.subr.mxu0 0.0
        %989 = vmatpush1.msra.mxu0 0.0
        %990 = vmatprep.subr.mxu0 0.0
        %991 = vmatpush1.msra.mxu0 0.0
        %992 = vmatprep.subr.mxu0 0.0
        %993 = vmatpush1.msra.mxu0 0.0
        %994 = vmatprep.subr.mxu0 0.0
        %995 = vmatpush1.msra.mxu0 0.0
        %996 = vmatprep.subr.mxu0 0.0
        %997 = vmatpush1.msra.mxu0 0.0
        %998 = vmatprep.subr.mxu0 0.0
        %999 = vmatpush1.msra.mxu0 0.0
        %1000 = vmatprep.subr.mxu0 0.0
        %1001 = vmatpush1.msra.mxu0 0.0
        %1002 = vmatprep.subr.mxu0 0.0
        %1003 = vmatpush1.msra.mxu0 0.0
        %1004 = vmatprep.subr.mxu0 0.0
        %1005 = vmatpush1.msra.mxu0 0.0
        %1006 = vmatprep.subr.mxu0 0.0
        %1007 = vmatpush1.msra.mxu0 0.0
        %1008 = vmatprep.mubr.f32.mxu0 0.0
        %1009 = vmatmul.mubr.f32.gmra.mrb[0].mxu0 %v942
        %v1010 = vpop.f32.mrb[0].mxu0
        %v1011 = vadd.f32 0.0, %v1010
        %v1012 = vpop.f32.mrb[0].mxu0
        %1013 = vdwg.mxu0
        %v1014 = vmul.f32 %v1011, %v1011
        %v1015 = vsel %vm204, %v1014, 0.0
        %1016 = vadd.xlane.f32.xlu0 %v1015
        %v1017 = vpop.xlane.xlu0 %1016
        %v1018 = vrot.slane %v1017, 4
        %v1019 = vadd.f32 %v1017, %v1018
        %v1020 = vrot.slane %v1019, 2
        %v1021 = vadd.f32 %v1019, %v1020
        %v1022 = vrot.slane %v1021, 1
        %v1023 = vadd.f32 %v1021, %v1022
        %s1024 = vtos %v1023
        %s1025 = sadd.f32 %s1024, 1e-30
        %v1026 = vstv %s1025
        %v1027 = vrsqrt.pop %v1026
        %s1028 = vtos %v1027
        %v1029 = vstv %s1028
        %v1030 = vmul.f32 %v1011, %v1029
        %v1032 = vsel %vm204, %v1030, 0
        %1034 = vmatprep.subr.mxu0 0.0
        %1035 = vmatpush1.msra.mxu0 %v1030
        %1036 = vmatprep.subr.mxu0 0.0
        %1037 = vmatpush1.msra.mxu0 0.0
        %1038 = vmatprep.subr.mxu0 0.0
        %1039 = vmatpush1.msra.mxu0 0.0
        %1040 = vmatprep.subr.mxu0 0.0
        %1041 = vmatpush1.msra.mxu0 0.0
        %1042 = vmatprep.subr.mxu0 0.0
        %1043 = vmatpush1.msra.mxu0 0.0
        %1044 = vmatprep.subr.mxu0 0.0
        %1045 = vmatpush1.msra.mxu0 0.0
        %1046 = vmatprep.subr.mxu0 0.0
        %1047 = vmatpush1.msra.mxu0 0.0
        %1048 = vmatprep.subr.mxu0 0.0
        %1049 = vmatpush1.msra.mxu0 0.0
        %1050 = vmatprep.subr.mxu0 0.0
        %1051 = vmatpush1.msra.mxu0 0.0
        %1052 = vmatprep.subr.mxu0 0.0
        %1053 = vmatpush1.msra.mxu0 0.0
        %1054 = vmatprep.subr.mxu0 0.0
        %1055 = vmatpush1.msra.mxu0 0.0
        %1056 = vmatprep.subr.mxu0 0.0
        %1057 = vmatpush1.msra.mxu0 0.0
        %1058 = vmatprep.subr.mxu0 0.0
        %1059 = vmatpush1.msra.mxu0 0.0
        %1060 = vmatprep.subr.mxu0 0.0
        %1061 = vmatpush1.msra.mxu0 0.0
        %1062 = vmatprep.subr.mxu0 0.0
        %1063 = vmatpush1.msra.mxu0 0.0
        %1064 = vmatprep.subr.mxu0 0.0
        %1065 = vmatpush1.msra.mxu0 0.0
        %1066 = vmatprep.subr.mxu0 0.0
        %1067 = vmatpush1.msra.mxu0 0.0
        %1068 = vmatprep.subr.mxu0 0.0
        %1069 = vmatpush1.msra.mxu0 0.0
        %1070 = vmatprep.subr.mxu0 0.0
        %1071 = vmatpush1.msra.mxu0 0.0
        %1072 = vmatprep.subr.mxu0 0.0
        %1073 = vmatpush1.msra.mxu0 0.0
        %1074 = vmatprep.subr.mxu0 0.0
        %1075 = vmatpush1.msra.mxu0 0.0
        %1076 = vmatprep.subr.mxu0 0.0
        %1077 = vmatpush1.msra.mxu0 0.0
        %1078 = vmatprep.subr.mxu0 0.0
        %1079 = vmatpush1.msra.mxu0 0.0
        %1080 = vmatprep.subr.mxu0 0.0
        %1081 = vmatpush1.msra.mxu0 0.0
        %1082 = vmatprep.subr.mxu0 0.0
        %1083 = vmatpush1.msra.mxu0 0.0
        %1084 = vmatprep.subr.mxu0 0.0
        %1085 = vmatpush1.msra.mxu0 0.0
        %1086 = vmatprep.subr.mxu0 0.0
        %1087 = vmatpush1.msra.mxu0 0.0
        %1088 = vmatprep.subr.mxu0 0.0
        %1089 = vmatpush1.msra.mxu0 0.0
        %1090 = vmatprep.subr.mxu0 0.0
        %1091 = vmatpush1.msra.mxu0 0.0
        %1092 = vmatprep.subr.mxu0 0.0
        %1093 = vmatpush1.msra.mxu0 0.0
        %1094 = vmatprep.subr.mxu0 0.0
        %1095 = vmatpush1.msra.mxu0 0.0
        %1096 = vmatprep.subr.mxu0 0.0
        %1097 = vmatpush1.msra.mxu0 0.0
        %1098 = vmatprep.mubr.f32.mxu0 0.0
        %1099 = vmatmul.mubr.f32.gmra.mrb[0].mxu0 %v1032
        %v1100 = vpop.f32.mrb[0].mxu0
        %v1101 = vadd.f32 0.0, %v1100
        %v1102 = vpop.f32.mrb[0].mxu0
        %1103 = vdwg.mxu0
        %v1104 = vmul.f32 %v1101, %v1101
        %v1105 = vsel %vm204, %v1104, 0.0
        %1106 = vadd.xlane.f32.xlu0 %v1105
        %v1107 = vpop.xlane.xlu0 %1106
        %v1108 = vrot.slane %v1107, 4
        %v1109 = vadd.f32 %v1107, %v1108
        %v1110 = vrot.slane %v1109, 2
        %v1111 = vadd.f32 %v1109, %v1110
        %v1112 = vrot.slane %v1111, 1
        %v1113 = vadd.f32 %v1111, %v1112
        %s1114 = vtos %v1113
        %s1115 = sadd.f32 %s1114, 1e-30
        %v1116 = vstv %s1115
        %v1117 = vrsqrt.pop %v1116
        %s1118 = vtos %v1117
        %v1119 = vstv %s1118
        %v1120 = vmul.f32 %v1101, %v1119
        %v1121 = vlaneseq
        %v1122 = vand.u32 %v1121, 127
        %v1123 = vmul.u32 %v1122, 1103515245
        %v1124 = vadd.s32 %v1123, 12345
        %v1125 = vand.u32 %v1124, 1023
        %v1126 = vcvt.s32.f32 %v1125
        %v1127 = vmul.f32 %v1126, 0.0009765625
        %v1128 = vadd.f32 %v1127, 0.5
        %v1130 = vsel %vm204, %v1128, 0
        %1132 = vmatprep.subr.mxu0 0.0
        %1133 = vmatpush1.msra.mxu0 %v1120
        %1134 = vmatprep.subr.mxu0 0.0
        %1135 = vmatpush1.msra.mxu0 0.0
        %1136 = vmatprep.subr.mxu0 0.0
        %1137 = vmatpush1.msra.mxu0 0.0
        %1138 = vmatprep.subr.mxu0 0.0
        %1139 = vmatpush1.msra.mxu0 0.0
        %1140 = vmatprep.subr.mxu0 0.0
        %1141 = vmatpush1.msra.mxu0 0.0
        %1142 = vmatprep.subr.mxu0 0.0
        %1143 = vmatpush1.msra.mxu0 0.0
        %1144 = vmatprep.subr.mxu0 0.0
        %1145 = vmatpush1.msra.mxu0 0.0
        %1146 = vmatprep.subr.mxu0 0.0
        %1147 = vmatpush1.msra.mxu0 0.0
        %1148 = vmatprep.subr.mxu0 0.0
        %1149 = vmatpush1.msra.mxu0 0.0
        %1150 = vmatprep.subr.mxu0 0.0
        %1151 = vmatpush1.msra.mxu0 0.0
        %1152 = vmatprep.subr.mxu0 0.0
        %1153 = vmatpush1.msra.mxu0 0.0
        %1154 = vmatprep.subr.mxu0 0.0
        %1155 = vmatpush1.msra.mxu0 0.0
        %1156 = vmatprep.subr.mxu0 0.0
        %1157 = vmatpush1.msra.mxu0 0.0
        %1158 = vmatprep.subr.mxu0 0.0
        %1159 = vmatpush1.msra.mxu0 0.0
        %1160 = vmatprep.subr.mxu0 0.0
        %1161 = vmatpush1.msra.mxu0 0.0
        %1162 = vmatprep.subr.mxu0 0.0
        %1163 = vmatpush1.msra.mxu0 0.0
        %1164 = vmatprep.subr.mxu0 0.0
        %1165 = vmatpush1.msra.mxu0 0.0
        %1166 = vmatprep.subr.mxu0 0.0
        %1167 = vmatpush1.msra.mxu0 0.0
        %1168 = vmatprep.subr.mxu0 0.0
        %1169 = vmatpush1.msra.mxu0 0.0
        %1170 = vmatprep.subr.mxu0 0.0
        %1171 = vmatpush1.msra.mxu0 0.0
        %1172 = vmatprep.subr.mxu0 0.0
        %1173 = vmatpush1.msra.mxu0 0.0
        %1174 = vmatprep.subr.mxu0 0.0
        %1175 = vmatpush1.msra.mxu0 0.0
        %1176 = vmatprep.subr.mxu0 0.0
        %1177 = vmatpush1.msra.mxu0 0.0
        %1178 = vmatprep.subr.mxu0 0.0
        %1179 = vmatpush1.msra.mxu0 0.0
        %1180 = vmatprep.subr.mxu0 0.0
        %1181 = vmatpush1.msra.mxu0 0.0
        %1182 = vmatprep.subr.mxu0 0.0
        %1183 = vmatpush1.msra.mxu0 0.0
        %1184 = vmatprep.subr.mxu0 0.0
        %1185 = vmatpush1.msra.mxu0 0.0
        %1186 = vmatprep.subr.mxu0 0.0
        %1187 = vmatpush1.msra.mxu0 0.0
        %1188 = vmatprep.subr.mxu0 0.0
        %1189 = vmatpush1.msra.mxu0 0.0
        %1190 = vmatprep.subr.mxu0 0.0
        %1191 = vmatpush1.msra.mxu0 0.0
        %1192 = vmatprep.subr.mxu0 0.0
        %1193 = vmatpush1.msra.mxu0 0.0
        %1194 = vmatprep.subr.mxu0 0.0
        %1195 = vmatpush1.msra.mxu0 0.0
        %1196 = vmatprep.mubr.f32.mxu0 0.0
        %1197 = vmatmul.mubr.f32.gmra.mrb[0].mxu0 %v1130
        %v1198 = vpop.f32.mrb[0].mxu0
        %v1199 = vadd.f32 0.0, %v1198
        %v1200 = vpop.f32.mrb[0].mxu0
        %1201 = vdwg.mxu0
        %v1203 = vsel %vm204, %v1199, 0
        %1205 = vmatprep.subr.mxu0 0.0
        %1206 = vmatpush1.msra.mxu0 %v200
        %1207 = vmatprep.subr.mxu0 0.0
        %1208 = vmatpush1.msra.mxu0 0.0
        %1209 = vmatprep.subr.mxu0 0.0
        %1210 = vmatpush1.msra.mxu0 0.0
        %1211 = vmatprep.subr.mxu0 0.0
        %1212 = vmatpush1.msra.mxu0 0.0
        %1213 = vmatprep.subr.mxu0 0.0
        %1214 = vmatpush1.msra.mxu0 0.0
        %1215 = vmatprep.subr.mxu0 0.0
        %1216 = vmatpush1.msra.mxu0 0.0
        %1217 = vmatprep.subr.mxu0 0.0
        %1218 = vmatpush1.msra.mxu0 0.0
        %1219 = vmatprep.subr.mxu0 0.0
        %1220 = vmatpush1.msra.mxu0 0.0
        %1221 = vmatprep.subr.mxu0 0.0
        %1222 = vmatpush1.msra.mxu0 0.0
        %1223 = vmatprep.subr.mxu0 0.0
        %1224 = vmatpush1.msra.mxu0 0.0
        %1225 = vmatprep.subr.mxu0 0.0
        %1226 = vmatpush1.msra.mxu0 0.0
        %1227 = vmatprep.subr.mxu0 0.0
        %1228 = vmatpush1.msra.mxu0 0.0
        %1229 = vmatprep.subr.mxu0 0.0
        %1230 = vmatpush1.msra.mxu0 0.0
        %1231 = vmatprep.subr.mxu0 0.0
        %1232 = vmatpush1.msra.mxu0 0.0
        %1233 = vmatprep.subr.mxu0 0.0
        %1234 = vmatpush1.msra.mxu0 0.0
        %1235 = vmatprep.subr.mxu0 0.0
        %1236 = vmatpush1.msra.mxu0 0.0
        %1237 = vmatprep.subr.mxu0 0.0
        %1238 = vmatpush1.msra.mxu0 0.0
        %1239 = vmatprep.subr.mxu0 0.0
        %1240 = vmatpush1.msra.mxu0 0.0
        %1241 = vmatprep.subr.mxu0 0.0
        %1242 = vmatpush1.msra.mxu0 0.0
        %1243 = vmatprep.subr.mxu0 0.0
        %1244 = vmatpush1.msra.mxu0 0.0
        %1245 = vmatprep.subr.mxu0 0.0
        %1246 = vmatpush1.msra.mxu0 0.0
        %1247 = vmatprep.subr.mxu0 0.0
        %1248 = vmatpush1.msra.mxu0 0.0
        %1249 = vmatprep.subr.mxu0 0.0
        %1250 = vmatpush1.msra.mxu0 0.0
        %1251 = vmatprep.subr.mxu0 0.0
        %1252 = vmatpush1.msra.mxu0 0.0
        %1253 = vmatprep.subr.mxu0 0.0
        %1254 = vmatpush1.msra.mxu0 0.0
        %1255 = vmatprep.subr.mxu0 0.0
        %1256 = vmatpush1.msra.mxu0 0.0
        %1257 = vmatprep.subr.mxu0 0.0
        %1258 = vmatpush1.msra.mxu0 0.0
        %1259 = vmatprep.subr.mxu0 0.0
        %1260 = vmatpush1.msra.mxu0 0.0
        %1261 = vmatprep.subr.mxu0 0.0
        %1262 = vmatpush1.msra.mxu0 0.0
        %1263 = vmatprep.subr.mxu0 0.0
        %1264 = vmatpush1.msra.mxu0 0.0
        %1265 = vmatprep.subr.mxu0 0.0
        %1266 = vmatpush1.msra.mxu0 0.0
        %1267 = vmatprep.subr.mxu0 0.0
        %1268 = vmatpush1.msra.mxu0 0.0
        %1269 = vmatprep.mubr.f32.mxu0 0.0
        %1270 = vmatmul.mubr.f32.gmra.mrb[0].mxu0 %v1203
        %v1271 = vpop.f32.mrb[0].mxu0
        %v1272 = vadd.f32 0.0, %v1271
        %v1273 = vpop.f32.mrb[0].mxu0
        %1274 = vdwg.mxu0
        %v1275 = vmul.f32 %v1199, %v1272
        %vm1276 = vcmask 57344
        %v1277 = vsel %vm1276, %v1275, 0.0
        %1278 = vadd.xlane.f32.xlu0 %v1277
        %v1279 = vpop.xlane.xlu0 %1278
        %v1280 = vrot.slane %v1279, 4
        %v1281 = vadd.f32 %v1279, %v1280
        %v1282 = vrot.slane %v1281, 2
        %v1283 = vadd.f32 %v1281, %v1282
        %v1284 = vrot.slane %v1283, 1
        %v1285 = vadd.f32 %v1283, %v1284
        %s1286 = vtos %v1285
        %v1287 = vmul.f32 %v1199, %v1199
        %v1288 = vsel %vm1276, %v1287, 0.0
        %1289 = vadd.xlane.f32.xlu0 %v1288
        %v1290 = vpop.xlane.xlu0 %1289
        %v1291 = vrot.slane %v1290, 4
        %v1292 = vadd.f32 %v1290, %v1291
        %v1293 = vrot.slane %v1292, 2
        %v1294 = vadd.f32 %v1292, %v1293
        %v1295 = vrot.slane %v1294, 1
        %v1296 = vadd.f32 %v1294, %v1295
        %s1297 = vtos %v1296
        %s1298 = sadd.f32 %s1297, 1e-30
        %v1299 = vstv %s1298
        %v1300 = vrcp.pop %v1299
        %s1301 = vtos %v1300
        %s1302 = smul.f32 %s1286, %s1301
        %v1303 = vstv %s1302
        %1304 = vst [vmem:[%s131] sm:$0xff] %v1303
        %s1305 = sand.u32 %s52, 1
        %s1306 = scalar_lea.sflag [#allocation4], %s1305
        %s1307 = sand.u32 %s52, 1
        %s1308 = smul.addr %s1307, 8
        %s1309 = scalar_lea.vmem [#allocation5], %s1308
        // Predicated region
        $region29: #{tpu_custom_call.1} parent=23 // pred_check
          %p1310 = pneg %p62
        $region30: #{tpu_custom_call.1} parent=23 // pred_check_branch
          %1312 = sbr.rel (%p1310) target = $region32
        $region31: #{tpu_custom_call.1} parent=23 // pred_region
          %s1314 = ssub.s32 128, 128
          %1315 = vsyncadd %s1306, %s1314
          %s1316 = smul.addr %s18, 128
          %s1317 = scalar_lea.hbm %s1, %s1316
          %s1319 = sshll.u32 %s1309, 4
          %s1320 = int_to_ptr.vmem [resolvable:$true] %s1319
          %1322 = dma.vmem_to_hbm [thread:$0]  %s1320, 128, %s1317, %s1306
        $region32: #{tpu_custom_call.1} parent=23 // pred_fallthru
          _
      $region24: #{tpu_custom_call.1} parent=5 // pred_fallthru
        _
      %p1323 = scmp.le.s32.totalorder 2, %s13
      // Predicated region
      $region33: #{tpu_custom_call.1} parent=5 // pred_check
        %p1324 = pneg %p1323
      $region34: #{tpu_custom_call.1} parent=5 // pred_check_branch
        %1326 = sbr.rel (%p1324) target = $region36
      $region35: #{tpu_custom_call.1} parent=5 // pred_region
        %s1327 = ssub.s32 %s13, 2
        // Predicated region
        $region37: #{tpu_custom_call.1} parent=35 // pred_check
          %p1328 = pneg %p68
        $region38: #{tpu_custom_call.1} parent=35 // pred_check_branch
          %1330 = sbr.rel (%p1328) target = $region40
        $region39: #{tpu_custom_call.1} parent=35 // pred_region
          %s1331 = sand.u32 %s53, 1
          %s1332 = scalar_lea.sflag [#allocation4], %s1331
          %s1333 = sand.u32 %s53, 1
          %s1334 = smul.addr %s1333, 8
          %s1335 = scalar_lea.vmem [#allocation5], %s1334
          %1336 = dma.done %s1332, 128
        $region40: #{tpu_custom_call.1} parent=35 // pred_fallthru
          _
      $region36: #{tpu_custom_call.1} parent=5 // pred_fallthru
        _
    $region6: #{tpu_custom_call.1} parent=1 // loop_footer
      %s17 = sadd.s32 1, %s13
    $region7: #{tpu_custom_call.1} parent=1 // loop_footer_branch
      %12 = sbr.rel target = $region3
    $region8: #{tpu_custom_call.1} parent=1 // loop_exit
      _
    %1337 = vsyncpa [#allocation3], 1
    %s1338 = scalar_lea.sflag [#allocation3], 1
    %1339 = vsyncpa %s1338, 1
    %1340 = vsyncpa [#allocation4], 1
    %s1341 = scalar_lea.sflag [#allocation4], 1
    %1342 = vsyncpa %s1341, 1

</llo_original>
